<compile_context>
chip_gen: v7x
topology: tpu7x:2x2x1
jax: 0.10.0
libtpu: 0.0.40
codegen_flags: <defaults>
</compile_context>

<pallas_src>
import functools

import jax
import jax.numpy as jnp
from jax import lax
from jax.experimental import pallas as pl
from jax.experimental.pallas import tpu as pltpu

C_IN_SIG = 2                    # two complex signal channels x_A, x_B
C_PLANES = 4                    # Re(A), Im(A), Re(B), Im(B) real planes
N_FEAT = 3                      # ['real', 'imag', 'abs']
C_FEAT = C_IN_SIG * N_FEAT      # 6 feature channels
C_HID = 1                       # out_channels[0]
C_OUT = 2                       # last layer -> (Re, Im) of predistorted signal
K1 = 5
K2 = 5
PAD = K1 // 2                   # 'same' padding (K1 == K2 == 5)
LANE = 128
MAX_BT = 8                      # batch rows packed per grid step (sublanes)


def _sigmoid(x):
    # exp on the EUP; exact reciprocal keeps the divide off the critical VALU path.
    return pl.reciprocal(1.0 + jnp.exp(-x), approx=False)


def _rvcnn_kernel(x_ref, w1_ref, b1_ref, w2_ref, b2_ref, out_ref, *, l_true):
    # x_ref  : (4, Bt, Lp)  channel-major real planes, zero-padded tail lanes
    # w1_ref (30,), b1_ref (1,), w2_ref (10,), b2_ref (2,)  flat weights (SMEM)
    # out_ref: (2, Bt, Lp)  Re / Im of the last layer (lane-dense slab)
    _, bt, lp = x_ref.shape

    # ---- hoist all scalar weight reads (SMEM sld) ahead of the compute ----
    w1 = [[w1_ref[ic * K1 + k] for k in range(K1)] for ic in range(C_FEAT)]
    b1 = b1_ref[0]
    w2 = [[w2_ref[oc * K2 + k] for k in range(K2)] for oc in range(C_OUT)]
    b2 = [b2_ref[oc] for oc in range(C_OUT)]

    # ---- feature extraction: Re(A), Im(A), Re(B), Im(B), |A|, |B| ----
    re_a = x_ref[0]
    im_a = x_ref[1]
    re_b = x_ref[2]
    im_b = x_ref[3]
    abs_a = jnp.sqrt(re_a * re_a + im_a * im_a)
    abs_b = jnp.sqrt(re_b * re_b + im_b * im_b)
    feats = (re_a, im_a, re_b, im_b, abs_a, abs_b)

    # lane index + the four edge masks (shared by both conv layers)
    lane = lax.broadcasted_iota(jnp.int32, (bt, lp), 1)
    edge_mask = {}
    for d in range(-PAD, PAD + 1):
        if d > 0:
            edge_mask[d] = lane < (lp - d)
        elif d < 0:
            edge_mask[d] = lane >= (-d)

    def shift(arr, d):
        # arr[:, n + d] with zero 'same'-padding outside [0, lp); circular
        # roll on the XLU + mask of the wrapped lanes.
        if d == 0:
            return arr
        rolled = pltpu.roll(arr, shift=(-d) % lp, axis=1)
        return jnp.where(edge_mask[d], rolled, 0.0)

    # ---- layer 1: conv1d 6 -> 1, k=5, 'same', sigmoid ----
    # Mix the 6 channels per tap first (independent VALU chains), then roll
    # only the 5 mixed rows and tree-reduce.
    taps1 = []
    for k in range(K1):
        m0 = w1[0][k] * feats[0] + w1[1][k] * feats[1]
        m1 = w1[2][k] * feats[2] + w1[3][k] * feats[3]
        m2 = w1[4][k] * feats[4] + w1[5][k] * feats[5]
        taps1.append(shift(m0 + m1 + m2, k - PAD))
    acc1 = (taps1[0] + taps1[1]) + (taps1[2] + taps1[3]) + (taps1[4] + b1)
    h = _sigmoid(acc1)
    if l_true < lp:
        # zero the padded tail so layer 2's 'same' padding sees true zeros
        h = jnp.where(lane < l_true, h, 0.0)

    # ---- layer 2: conv1d 1 -> 2, k=5, 'same', sigmoid ----
    h_taps = [shift(h, k - PAD) for k in range(K2)]
    for oc in range(C_OUT):
        acc2 = ((w2[oc][0] * h_taps[0] + w2[oc][1] * h_taps[1])
                + (w2[oc][2] * h_taps[2] + w2[oc][3] * h_taps[3])
                + (w2[oc][4] * h_taps[4] + b2[oc]))
        out_ref[oc] = _sigmoid(acc2).astype(out_ref.dtype)


def rvcnn_forward(x, params):
    """x: complex64 (B, 2, L).  Returns complex64 (B, 1, L)."""
    B, C, L = x.shape
    assert C == C_IN_SIG
    w1, b1, w2, b2 = params

    xr = jnp.real(x).astype(jnp.float32)
    xi = jnp.imag(x).astype(jnp.float32)
    # channel-major planes: (4, B, L) = Re(A), Im(A), Re(B), Im(B)
    planes = jnp.stack([xr[:, 0], xi[:, 0], xr[:, 1], xi[:, 1]], axis=0)

    lp = pl.cdiv(L, LANE) * LANE            # lane-dense length
    bt = B if B < MAX_BT else MAX_BT        # batch rows per grid step
    bp = pl.cdiv(B, bt) * bt
    if lp != L or bp != B:
        planes = jnp.pad(planes, ((0, 0), (0, bp - B), (0, lp - L)))
    nb = bp // bt

    # NOTE: for long DPD captures (L ~ 1e5..1e6) this one-shot L block is the
    # right choice on v5e/v6e (a (4, bt, L) f32 slab is tiny vs 128 MiB VMEM);
    # only tile L (and raise vmem_limit_bytes) if it ever approaches the v7x
    # 64 MiB per-core budget.
    kernel = functools.partial(_rvcnn_kernel, l_true=L)
    y = pl.pallas_call(
        kernel,
        out_shape=jax.ShapeDtypeStruct((C_OUT, bp, lp), jnp.float32),
        grid=(nb,),
        in_specs=[
            pl.BlockSpec((C_PLANES, bt, lp), lambda i: (0, i, 0)),
            pl.BlockSpec(memory_space=pltpu.MemorySpace.SMEM),
            pl.BlockSpec(memory_space=pltpu.MemorySpace.SMEM),
            pl.BlockSpec(memory_space=pltpu.MemorySpace.SMEM),
            pl.BlockSpec(memory_space=pltpu.MemorySpace.SMEM),
        ],
        out_specs=pl.BlockSpec((C_OUT, bt, lp), lambda i: (0, i, 0)),
        compiler_params=pltpu.CompilerParams(
            dimension_semantics=("parallel",)),
    )(planes, w1.reshape(-1), b1.reshape(-1), w2.reshape(-1), b2.reshape(-1))

    y_re = y[0, :B, :L]
    y_im = y[1, :B, :L]
    return (y_re + 1j * y_im)[:, None, :]


def _sigmoid_ref(x):
    return 1.0 / (1.0 + jnp.exp(-x))


def rvcnn_reference(x, params):
    """Pure-JAX reference (same semantics) for a correctness check."""
    w1, b1, w2, b2 = params
    xr = jnp.real(x).astype(jnp.float32)
    xi = jnp.imag(x).astype(jnp.float32)
    xa = jnp.abs(x).astype(jnp.float32)
    f = jnp.stack([xr[:, 0], xi[:, 0], xr[:, 1], xi[:, 1],
                   xa[:, 0], xa[:, 1]], axis=1)          # (B, 6, L)

    def conv1d(inp, w, b):
        y = lax.conv_general_dilated(
            inp, w, window_strides=(1,), padding='SAME',
            dimension_numbers=('NCH', 'OIH', 'NCH'))
        return y + b[None, :, None]

    h = _sigmoid_ref(conv1d(f, w1, b1))
    yy = _sigmoid_ref(conv1d(h, w2, b2))
    return yy[:, :1, :] + 1j * yy[:, 1:2, :]


if __name__ == "__main__":
    key = jax.random.PRNGKey(0)
    B, L = 2, 128
    k1, k2, k3, k4, k5, k6 = jax.random.split(key, 6)

    # complex input signal: (batch, 2 complex channels, length)
    xre = jax.random.normal(k1, (B, C_IN_SIG, L), jnp.float32)
    xim = jax.random.normal(k2, (B, C_IN_SIG, L), jnp.float32)
    x = xre + 1j * xim                                     # complex64

    # deterministic parameter init (torch.nn.Conv1d weight shapes: (O, I, K))
    w1 = 0.1 * jax.random.normal(k3, (C_HID, C_FEAT, K1), jnp.float32)
    b1 = 0.1 * jax.random.normal(k4, (C_HID,), jnp.float32)
    w2 = 0.1 * jax.random.normal(k5, (C_OUT, C_HID, K2), jnp.float32)
    b2 = 0.1 * jax.random.normal(k6, (C_OUT,), jnp.float32)
    params = (w1, b1, w2, b2)

    out = jax.block_until_ready(rvcnn_forward(x, params))
    ref = rvcnn_reference(x, params)

    assert out.shape == (B, 1, L), out.shape
    assert out.dtype == jnp.complex64, out.dtype
    assert jnp.allclose(out, ref, atol=1e-5, rtol=1e-5), \
        float(jnp.max(jnp.abs(out - ref)))
    print("KERNEL_OK")
</pallas_src>

<mosaic_0001>
module attributes {stable_mosaic.version = 11 : i64} {
  func.func @_rvcnn_kernel(%arg0: i32, %arg1: memref<4x2x128xf32, #tpu.memory_space<vmem>>, %arg2: memref<30xf32, #tpu.memory_space<smem>>, %arg3: memref<1xf32, #tpu.memory_space<smem>>, %arg4: memref<10xf32, #tpu.memory_space<smem>>, %arg5: memref<2xf32, #tpu.memory_space<smem>>, %arg6: memref<2x2x128xf32, #tpu.memory_space<vmem>>) attributes {dimension_semantics = [#tpu.dimension_semantics<parallel>], iteration_bounds = array<i64: 1>, scalar_prefetch = 0 : i64, scratch_operands = 0 : i64, tpu.core_type = #tpu.core_type<tc>, window_params = [{transform_indices = @transform_0, window_bounds = array<i64: 4, 2, 128>}, {transform_indices = @transform_1, window_bounds = array<i64: 30>}, {transform_indices = @transform_2, window_bounds = array<i64: 1>}, {transform_indices = @transform_3, window_bounds = array<i64: 10>}, {transform_indices = @transform_4, window_bounds = array<i64: 2>}, {transform_indices = @transform_5, window_bounds = array<i64: 2, 2, 128>}]} {
    %c0 = arith.constant 0 : index
    %0 = memref.load %arg2[%c0] : memref<30xf32, #tpu.memory_space<smem>>
    %c1 = arith.constant 1 : index
    %1 = memref.load %arg2[%c1] : memref<30xf32, #tpu.memory_space<smem>>
    %c2 = arith.constant 2 : index
    %2 = memref.load %arg2[%c2] : memref<30xf32, #tpu.memory_space<smem>>
    %c3 = arith.constant 3 : index
    %3 = memref.load %arg2[%c3] : memref<30xf32, #tpu.memory_space<smem>>
    %c4 = arith.constant 4 : index
    %4 = memref.load %arg2[%c4] : memref<30xf32, #tpu.memory_space<smem>>
    %c5 = arith.constant 5 : index
    %5 = memref.load %arg2[%c5] : memref<30xf32, #tpu.memory_space<smem>>
    %c6 = arith.constant 6 : index
    %6 = memref.load %arg2[%c6] : memref<30xf32, #tpu.memory_space<smem>>
    %c7 = arith.constant 7 : index
    %7 = memref.load %arg2[%c7] : memref<30xf32, #tpu.memory_space<smem>>
    %c8 = arith.constant 8 : index
    %8 = memref.load %arg2[%c8] : memref<30xf32, #tpu.memory_space<smem>>
    %c9 = arith.constant 9 : index
    %9 = memref.load %arg2[%c9] : memref<30xf32, #tpu.memory_space<smem>>
    %c10 = arith.constant 10 : index
    %10 = memref.load %arg2[%c10] : memref<30xf32, #tpu.memory_space<smem>>
    %c11 = arith.constant 11 : index
    %11 = memref.load %arg2[%c11] : memref<30xf32, #tpu.memory_space<smem>>
    %c12 = arith.constant 12 : index
    %12 = memref.load %arg2[%c12] : memref<30xf32, #tpu.memory_space<smem>>
    %c13 = arith.constant 13 : index
    %13 = memref.load %arg2[%c13] : memref<30xf32, #tpu.memory_space<smem>>
    %c14 = arith.constant 14 : index
    %14 = memref.load %arg2[%c14] : memref<30xf32, #tpu.memory_space<smem>>
    %c15 = arith.constant 15 : index
    %15 = memref.load %arg2[%c15] : memref<30xf32, #tpu.memory_space<smem>>
    %c16 = arith.constant 16 : index
    %16 = memref.load %arg2[%c16] : memref<30xf32, #tpu.memory_space<smem>>
    %c17 = arith.constant 17 : index
    %17 = memref.load %arg2[%c17] : memref<30xf32, #tpu.memory_space<smem>>
    %c18 = arith.constant 18 : index
    %18 = memref.load %arg2[%c18] : memref<30xf32, #tpu.memory_space<smem>>
    %c19 = arith.constant 19 : index
    %19 = memref.load %arg2[%c19] : memref<30xf32, #tpu.memory_space<smem>>
    %c20 = arith.constant 20 : index
    %20 = memref.load %arg2[%c20] : memref<30xf32, #tpu.memory_space<smem>>
    %c21 = arith.constant 21 : index
    %21 = memref.load %arg2[%c21] : memref<30xf32, #tpu.memory_space<smem>>
    %c22 = arith.constant 22 : index
    %22 = memref.load %arg2[%c22] : memref<30xf32, #tpu.memory_space<smem>>
    %c23 = arith.constant 23 : index
    %23 = memref.load %arg2[%c23] : memref<30xf32, #tpu.memory_space<smem>>
    %c24 = arith.constant 24 : index
    %24 = memref.load %arg2[%c24] : memref<30xf32, #tpu.memory_space<smem>>
    %c25 = arith.constant 25 : index
    %25 = memref.load %arg2[%c25] : memref<30xf32, #tpu.memory_space<smem>>
    %c26 = arith.constant 26 : index
    %26 = memref.load %arg2[%c26] : memref<30xf32, #tpu.memory_space<smem>>
    %c27 = arith.constant 27 : index
    %27 = memref.load %arg2[%c27] : memref<30xf32, #tpu.memory_space<smem>>
    %c28 = arith.constant 28 : index
    %28 = memref.load %arg2[%c28] : memref<30xf32, #tpu.memory_space<smem>>
    %c29 = arith.constant 29 : index
    %29 = memref.load %arg2[%c29] : memref<30xf32, #tpu.memory_space<smem>>
    %c0_0 = arith.constant 0 : index
    %30 = memref.load %arg3[%c0_0] : memref<1xf32, #tpu.memory_space<smem>>
    %c0_1 = arith.constant 0 : index
    %31 = memref.load %arg4[%c0_1] : memref<10xf32, #tpu.memory_space<smem>>
    %c1_2 = arith.constant 1 : index
    %32 = memref.load %arg4[%c1_2] : memref<10xf32, #tpu.memory_space<smem>>
    %c2_3 = arith.constant 2 : index
    %33 = memref.load %arg4[%c2_3] : memref<10xf32, #tpu.memory_space<smem>>
    %c3_4 = arith.constant 3 : index
    %34 = memref.load %arg4[%c3_4] : memref<10xf32, #tpu.memory_space<smem>>
    %c4_5 = arith.constant 4 : index
    %35 = memref.load %arg4[%c4_5] : memref<10xf32, #tpu.memory_space<smem>>
    %c5_6 = arith.constant 5 : index
    %36 = memref.load %arg4[%c5_6] : memref<10xf32, #tpu.memory_space<smem>>
    %c6_7 = arith.constant 6 : index
    %37 = memref.load %arg4[%c6_7] : memref<10xf32, #tpu.memory_space<smem>>
    %c7_8 = arith.constant 7 : index
    %38 = memref.load %arg4[%c7_8] : memref<10xf32, #tpu.memory_space<smem>>
    %c8_9 = arith.constant 8 : index
    %39 = memref.load %arg4[%c8_9] : memref<10xf32, #tpu.memory_space<smem>>
    %c9_10 = arith.constant 9 : index
    %40 = memref.load %arg4[%c9_10] : memref<10xf32, #tpu.memory_space<smem>>
    %c0_11 = arith.constant 0 : index
    %41 = memref.load %arg5[%c0_11] : memref<2xf32, #tpu.memory_space<smem>>
    %c1_12 = arith.constant 1 : index
    %42 = memref.load %arg5[%c1_12] : memref<2xf32, #tpu.memory_space<smem>>
    %c0_13 = arith.constant 0 : index
    %c0_14 = arith.constant 0 : index
    %c0_15 = arith.constant 0 : index
    %43 = vector.load %arg1[%c0_13, %c0_14, %c0_15] : memref<4x2x128xf32, #tpu.memory_space<vmem>>, vector<1x2x128xf32>
    %44 = vector.shape_cast %43 : vector<1x2x128xf32> to vector<2x128xf32>
    %c1_16 = arith.constant 1 : index
    %c0_17 = arith.constant 0 : index
    %c0_18 = arith.constant 0 : index
    %45 = vector.load %arg1[%c1_16, %c0_17, %c0_18] : memref<4x2x128xf32, #tpu.memory_space<vmem>>, vector<1x2x128xf32>
    %46 = vector.shape_cast %45 : vector<1x2x128xf32> to vector<2x128xf32>
    %c2_19 = arith.constant 2 : index
    %c0_20 = arith.constant 0 : index
    %c0_21 = arith.constant 0 : index
    %47 = vector.load %arg1[%c2_19, %c0_20, %c0_21] : memref<4x2x128xf32, #tpu.memory_space<vmem>>, vector<1x2x128xf32>
    %48 = vector.shape_cast %47 : vector<1x2x128xf32> to vector<2x128xf32>
    %c3_22 = arith.constant 3 : index
    %c0_23 = arith.constant 0 : index
    %c0_24 = arith.constant 0 : index
    %49 = vector.load %arg1[%c3_22, %c0_23, %c0_24] : memref<4x2x128xf32, #tpu.memory_space<vmem>>, vector<1x2x128xf32>
    %50 = vector.shape_cast %49 : vector<1x2x128xf32> to vector<2x128xf32>
    %51 = arith.mulf %44, %44 : vector<2x128xf32>
    %52 = arith.mulf %46, %46 : vector<2x128xf32>
    %53 = arith.addf %51, %52 : vector<2x128xf32>
    %54 = math.sqrt %53 : vector<2x128xf32>
    %55 = arith.mulf %48, %48 : vector<2x128xf32>
    %56 = arith.mulf %50, %50 : vector<2x128xf32>
    %57 = arith.addf %55, %56 : vector<2x128xf32>
    %58 = math.sqrt %57 : vector<2x128xf32>
    %59 = tpu.iota {dimensions = array<i32: 1>} : vector<2x128xi32>
    %c2_i32 = arith.constant 2 : i32
    %60 = vector.broadcast %c2_i32 : i32 to vector<2x128xi32>
    %61 = arith.cmpi sge, %59, %60 : vector<2x128xi32>
    %c1_i32 = arith.constant 1 : i32
    %62 = vector.broadcast %c1_i32 : i32 to vector<2x128xi32>
    %63 = arith.cmpi sge, %59, %62 : vector<2x128xi32>
    %c127_i32 = arith.constant 127 : i32
    %64 = vector.broadcast %c127_i32 : i32 to vector<2x128xi32>
    %65 = arith.cmpi slt, %59, %64 : vector<2x128xi32>
    %c126_i32 = arith.constant 126 : i32
    %66 = vector.broadcast %c126_i32 : i32 to vector<2x128xi32>
    %67 = arith.cmpi slt, %59, %66 : vector<2x128xi32>
    %68 = vector.broadcast %0 : f32 to vector<2x128xf32>
    %69 = arith.mulf %68, %44 : vector<2x128xf32>
    %70 = vector.broadcast %5 : f32 to vector<2x128xf32>
    %71 = arith.mulf %70, %46 : vector<2x128xf32>
    %72 = arith.addf %69, %71 : vector<2x128xf32>
    %73 = vector.broadcast %10 : f32 to vector<2x128xf32>
    %74 = arith.mulf %73, %48 : vector<2x128xf32>
    %75 = vector.broadcast %15 : f32 to vector<2x128xf32>
    %76 = arith.mulf %75, %50 : vector<2x128xf32>
    %77 = arith.addf %74, %76 : vector<2x128xf32>
    %78 = vector.broadcast %20 : f32 to vector<2x128xf32>
    %79 = arith.mulf %78, %54 : vector<2x128xf32>
    %80 = vector.broadcast %25 : f32 to vector<2x128xf32>
    %81 = arith.mulf %80, %58 : vector<2x128xf32>
    %82 = arith.addf %79, %81 : vector<2x128xf32>
    %83 = arith.addf %72, %77 : vector<2x128xf32>
    %84 = arith.addf %83, %82 : vector<2x128xf32>
    %c2_i32_25 = arith.constant 2 : i32
    %85 = tpu.dynamic_rotate %84 by %c2_i32_25 dim 1 : vector<2x128xf32>, i32 -> vector<2x128xf32>
    %cst = arith.constant 0.000000e+00 : f32
    %86 = vector.broadcast %cst : f32 to vector<2x128xf32>
    %87 = arith.select %61, %85, %86 : vector<2x128xi1>, vector<2x128xf32>
    %88 = vector.broadcast %1 : f32 to vector<2x128xf32>
    %89 = arith.mulf %88, %44 : vector<2x128xf32>
    %90 = vector.broadcast %6 : f32 to vector<2x128xf32>
    %91 = arith.mulf %90, %46 : vector<2x128xf32>
    %92 = arith.addf %89, %91 : vector<2x128xf32>
    %93 = vector.broadcast %11 : f32 to vector<2x128xf32>
    %94 = arith.mulf %93, %48 : vector<2x128xf32>
    %95 = vector.broadcast %16 : f32 to vector<2x128xf32>
    %96 = arith.mulf %95, %50 : vector<2x128xf32>
    %97 = arith.addf %94, %96 : vector<2x128xf32>
    %98 = vector.broadcast %21 : f32 to vector<2x128xf32>
    %99 = arith.mulf %98, %54 : vector<2x128xf32>
    %100 = vector.broadcast %26 : f32 to vector<2x128xf32>
    %101 = arith.mulf %100, %58 : vector<2x128xf32>
    %102 = arith.addf %99, %101 : vector<2x128xf32>
    %103 = arith.addf %92, %97 : vector<2x128xf32>
    %104 = arith.addf %103, %102 : vector<2x128xf32>
    %c1_i32_26 = arith.constant 1 : i32
    %105 = tpu.dynamic_rotate %104 by %c1_i32_26 dim 1 : vector<2x128xf32>, i32 -> vector<2x128xf32>
    %cst_27 = arith.constant 0.000000e+00 : f32
    %106 = vector.broadcast %cst_27 : f32 to vector<2x128xf32>
    %107 = arith.select %63, %105, %106 : vector<2x128xi1>, vector<2x128xf32>
    %108 = vector.broadcast %2 : f32 to vector<2x128xf32>
    %109 = arith.mulf %108, %44 : vector<2x128xf32>
    %110 = vector.broadcast %7 : f32 to vector<2x128xf32>
    %111 = arith.mulf %110, %46 : vector<2x128xf32>
    %112 = arith.addf %109, %111 : vector<2x128xf32>
    %113 = vector.broadcast %12 : f32 to vector<2x128xf32>
    %114 = arith.mulf %113, %48 : vector<2x128xf32>
    %115 = vector.broadcast %17 : f32 to vector<2x128xf32>
    %116 = arith.mulf %115, %50 : vector<2x128xf32>
    %117 = arith.addf %114, %116 : vector<2x128xf32>
    %118 = vector.broadcast %22 : f32 to vector<2x128xf32>
    %119 = arith.mulf %118, %54 : vector<2x128xf32>
    %120 = vector.broadcast %27 : f32 to vector<2x128xf32>
    %121 = arith.mulf %120, %58 : vector<2x128xf32>
    %122 = arith.addf %119, %121 : vector<2x128xf32>
    %123 = arith.addf %112, %117 : vector<2x128xf32>
    %124 = arith.addf %123, %122 : vector<2x128xf32>
    %125 = vector.broadcast %3 : f32 to vector<2x128xf32>
    %126 = arith.mulf %125, %44 : vector<2x128xf32>
    %127 = vector.broadcast %8 : f32 to vector<2x128xf32>
    %128 = arith.mulf %127, %46 : vector<2x128xf32>
    %129 = arith.addf %126, %128 : vector<2x128xf32>
    %130 = vector.broadcast %13 : f32 to vector<2x128xf32>
    %131 = arith.mulf %130, %48 : vector<2x128xf32>
    %132 = vector.broadcast %18 : f32 to vector<2x128xf32>
    %133 = arith.mulf %132, %50 : vector<2x128xf32>
    %134 = arith.addf %131, %133 : vector<2x128xf32>
    %135 = vector.broadcast %23 : f32 to vector<2x128xf32>
    %136 = arith.mulf %135, %54 : vector<2x128xf32>
    %137 = vector.broadcast %28 : f32 to vector<2x128xf32>
    %138 = arith.mulf %137, %58 : vector<2x128xf32>
    %139 = arith.addf %136, %138 : vector<2x128xf32>
    %140 = arith.addf %129, %134 : vector<2x128xf32>
    %141 = arith.addf %140, %139 : vector<2x128xf32>
    %c127_i32_28 = arith.constant 127 : i32
    %142 = tpu.dynamic_rotate %141 by %c127_i32_28 dim 1 : vector<2x128xf32>, i32 -> vector<2x128xf32>
    %cst_29 = arith.constant 0.000000e+00 : f32
    %143 = vector.broadcast %cst_29 : f32 to vector<2x128xf32>
    %144 = arith.select %65, %142, %143 : vector<2x128xi1>, vector<2x128xf32>
    %145 = vector.broadcast %4 : f32 to vector<2x128xf32>
    %146 = arith.mulf %145, %44 : vector<2x128xf32>
    %147 = vector.broadcast %9 : f32 to vector<2x128xf32>
    %148 = arith.mulf %147, %46 : vector<2x128xf32>
    %149 = arith.addf %146, %148 : vector<2x128xf32>
    %150 = vector.broadcast %14 : f32 to vector<2x128xf32>
    %151 = arith.mulf %150, %48 : vector<2x128xf32>
    %152 = vector.broadcast %19 : f32 to vector<2x128xf32>
    %153 = arith.mulf %152, %50 : vector<2x128xf32>
    %154 = arith.addf %151, %153 : vector<2x128xf32>
    %155 = vector.broadcast %24 : f32 to vector<2x128xf32>
    %156 = arith.mulf %155, %54 : vector<2x128xf32>
    %157 = vector.broadcast %29 : f32 to vector<2x128xf32>
    %158 = arith.mulf %157, %58 : vector<2x128xf32>
    %159 = arith.addf %156, %158 : vector<2x128xf32>
    %160 = arith.addf %149, %154 : vector<2x128xf32>
    %161 = arith.addf %160, %159 : vector<2x128xf32>
    %c126_i32_30 = arith.constant 126 : i32
    %162 = tpu.dynamic_rotate %161 by %c126_i32_30 dim 1 : vector<2x128xf32>, i32 -> vector<2x128xf32>
    %cst_31 = arith.constant 0.000000e+00 : f32
    %163 = vector.broadcast %cst_31 : f32 to vector<2x128xf32>
    %164 = arith.select %67, %162, %163 : vector<2x128xi1>, vector<2x128xf32>
    %165 = arith.addf %87, %107 : vector<2x128xf32>
    %166 = arith.addf %124, %144 : vector<2x128xf32>
    %167 = arith.addf %165, %166 : vector<2x128xf32>
    %168 = vector.broadcast %30 : f32 to vector<2x128xf32>
    %169 = arith.addf %164, %168 : vector<2x128xf32>
    %170 = arith.addf %167, %169 : vector<2x128xf32>
    %cst_32 = arith.constant 0.000000e+00 : f32
    %171 = vector.broadcast %cst_32 : f32 to vector<2x128xf32>
    %172 = arith.subf %171, %170 : vector<2x128xf32>
    %173 = math.exp %172 : vector<2x128xf32>
    %cst_33 = arith.constant 1.000000e+00 : f32
    %174 = vector.broadcast %cst_33 : f32 to vector<2x128xf32>
    %175 = arith.addf %174, %173 : vector<2x128xf32>
    %176 = tpu.reciprocal %175 : vector<2x128xf32> -> vector<2x128xf32>
    %c2_i32_34 = arith.constant 2 : i32
    %177 = tpu.dynamic_rotate %176 by %c2_i32_34 dim 1 : vector<2x128xf32>, i32 -> vector<2x128xf32>
    %cst_35 = arith.constant 0.000000e+00 : f32
    %178 = vector.broadcast %cst_35 : f32 to vector<2x128xf32>
    %179 = arith.select %61, %177, %178 : vector<2x128xi1>, vector<2x128xf32>
    %c1_i32_36 = arith.constant 1 : i32
    %180 = tpu.dynamic_rotate %176 by %c1_i32_36 dim 1 : vector<2x128xf32>, i32 -> vector<2x128xf32>
    %cst_37 = arith.constant 0.000000e+00 : f32
    %181 = vector.broadcast %cst_37 : f32 to vector<2x128xf32>
    %182 = arith.select %63, %180, %181 : vector<2x128xi1>, vector<2x128xf32>
    %c127_i32_38 = arith.constant 127 : i32
    %183 = tpu.dynamic_rotate %176 by %c127_i32_38 dim 1 : vector<2x128xf32>, i32 -> vector<2x128xf32>
    %cst_39 = arith.constant 0.000000e+00 : f32
    %184 = vector.broadcast %cst_39 : f32 to vector<2x128xf32>
    %185 = arith.select %65, %183, %184 : vector<2x128xi1>, vector<2x128xf32>
    %c126_i32_40 = arith.constant 126 : i32
    %186 = tpu.dynamic_rotate %176 by %c126_i32_40 dim 1 : vector<2x128xf32>, i32 -> vector<2x128xf32>
    %cst_41 = arith.constant 0.000000e+00 : f32
    %187 = vector.broadcast %cst_41 : f32 to vector<2x128xf32>
    %188 = arith.select %67, %186, %187 : vector<2x128xi1>, vector<2x128xf32>
    %189 = vector.broadcast %31 : f32 to vector<2x128xf32>
    %190 = arith.mulf %189, %179 : vector<2x128xf32>
    %191 = vector.broadcast %32 : f32 to vector<2x128xf32>
    %192 = arith.mulf %191, %182 : vector<2x128xf32>
    %193 = arith.addf %190, %192 : vector<2x128xf32>
    %194 = vector.broadcast %33 : f32 to vector<2x128xf32>
    %195 = arith.mulf %194, %176 : vector<2x128xf32>
    %196 = vector.broadcast %34 : f32 to vector<2x128xf32>
    %197 = arith.mulf %196, %185 : vector<2x128xf32>
    %198 = arith.addf %195, %197 : vector<2x128xf32>
    %199 = arith.addf %193, %198 : vector<2x128xf32>
    %200 = vector.broadcast %35 : f32 to vector<2x128xf32>
    %201 = arith.mulf %200, %188 : vector<2x128xf32>
    %202 = vector.broadcast %41 : f32 to vector<2x128xf32>
    %203 = arith.addf %201, %202 : vector<2x128xf32>
    %204 = arith.addf %199, %203 : vector<2x128xf32>
    %cst_42 = arith.constant 0.000000e+00 : f32
    %205 = vector.broadcast %cst_42 : f32 to vector<2x128xf32>
    %206 = arith.subf %205, %204 : vector<2x128xf32>
    %207 = math.exp %206 : vector<2x128xf32>
    %cst_43 = arith.constant 1.000000e+00 : f32
    %208 = vector.broadcast %cst_43 : f32 to vector<2x128xf32>
    %209 = arith.addf %208, %207 : vector<2x128xf32>
    %210 = tpu.reciprocal %209 : vector<2x128xf32> -> vector<2x128xf32>
    %c0_44 = arith.constant 0 : index
    %c0_45 = arith.constant 0 : index
    %c0_46 = arith.constant 0 : index
    %211 = vector.load %arg6[%c0_44, %c0_45, %c0_46] : memref<2x2x128xf32, #tpu.memory_space<vmem>>, vector<1x2x128xf32>
    %212 = vector.shape_cast %211 : vector<1x2x128xf32> to vector<2x128xf32>
    %213 = vector.shape_cast %210 : vector<2x128xf32> to vector<1x2x128xf32>
    tpu.vector_store %arg6[%c0_44, %c0_45, %c0_46], %213 {strides = array<i32>} : memref<2x2x128xf32, #tpu.memory_space<vmem>>, vector<1x2x128xf32>,
    %214 = vector.broadcast %36 : f32 to vector<2x128xf32>
    %215 = arith.mulf %214, %179 : vector<2x128xf32>
    %216 = vector.broadcast %37 : f32 to vector<2x128xf32>
    %217 = arith.mulf %216, %182 : vector<2x128xf32>
    %218 = arith.addf %215, %217 : vector<2x128xf32>
    %219 = vector.broadcast %38 : f32 to vector<2x128xf32>
    %220 = arith.mulf %219, %176 : vector<2x128xf32>
    %221 = vector.broadcast %39 : f32 to vector<2x128xf32>
    %222 = arith.mulf %221, %185 : vector<2x128xf32>
    %223 = arith.addf %220, %222 : vector<2x128xf32>
    %224 = arith.addf %218, %223 : vector<2x128xf32>
    %225 = vector.broadcast %40 : f32 to vector<2x128xf32>
    %226 = arith.mulf %225, %188 : vector<2x128xf32>
    %227 = vector.broadcast %42 : f32 to vector<2x128xf32>
    %228 = arith.addf %226, %227 : vector<2x128xf32>
    %229 = arith.addf %224, %228 : vector<2x128xf32>
    %cst_47 = arith.constant 0.000000e+00 : f32
    %230 = vector.broadcast %cst_47 : f32 to vector<2x128xf32>
    %231 = arith.subf %230, %229 : vector<2x128xf32>
    %232 = math.exp %231 : vector<2x128xf32>
    %cst_48 = arith.constant 1.000000e+00 : f32
    %233 = vector.broadcast %cst_48 : f32 to vector<2x128xf32>
    %234 = arith.addf %233, %232 : vector<2x128xf32>
    %235 = tpu.reciprocal %234 : vector<2x128xf32> -> vector<2x128xf32>
    %c1_49 = arith.constant 1 : index
    %c0_50 = arith.constant 0 : index
    %c0_51 = arith.constant 0 : index
    %236 = vector.load %arg6[%c1_49, %c0_50, %c0_51] : memref<2x2x128xf32, #tpu.memory_space<vmem>>, vector<1x2x128xf32>
    %237 = vector.shape_cast %236 : vector<1x2x128xf32> to vector<2x128xf32>
    %238 = vector.shape_cast %235 : vector<2x128xf32> to vector<1x2x128xf32>
    tpu.vector_store %arg6[%c1_49, %c0_50, %c0_51], %238 {strides = array<i32>} : memref<2x2x128xf32, #tpu.memory_space<vmem>>, vector<1x2x128xf32>,
    return
  }
  func.func @transform_0(%arg0: i32) -> (i32, i32, i32) {
    %c0_i32 = arith.constant 0 : i32
    %c0_i32_0 = arith.constant 0 : i32
    %c0_i32_1 = arith.constant 0 : i32
    return %c0_i32, %arg0, %c0_i32_0 : i32, i32, i32
  }
  func.func @transform_1(%arg0: i32) -> i32 {
    %c0_i32 = arith.constant 0 : i32
    %c0_i32_0 = arith.constant 0 : i32
    return %c0_i32 : i32
  }
  func.func @transform_2(%arg0: i32) -> i32 {
    %c0_i32 = arith.constant 0 : i32
    %c0_i32_0 = arith.constant 0 : i32
    return %c0_i32 : i32
  }
  func.func @transform_3(%arg0: i32) -> i32 {
    %c0_i32 = arith.constant 0 : i32
    %c0_i32_0 = arith.constant 0 : i32
    return %c0_i32 : i32
  }
  func.func @transform_4(%arg0: i32) -> i32 {
    %c0_i32 = arith.constant 0 : i32
    %c0_i32_0 = arith.constant 0 : i32
    return %c0_i32 : i32
  }
  func.func @transform_5(%arg0: i32) -> (i32, i32, i32) {
    %c0_i32 = arith.constant 0 : i32
    %c0_i32_0 = arith.constant 0 : i32
    %c0_i32_1 = arith.constant 0 : i32
    return %c0_i32, %arg0, %c0_i32_0 : i32, i32, i32
  }
}

</mosaic_0001>

<llo_original>
// kernel: tpu_custom_call.1
$region0: #{tpu_custom_call.1}
  #allocation0 [shape = 'u32[]', space=smem, size = 0x4, offset = 0x4, fixed_abs, tag = 'smem constant byte address 0x4 - core index']
  #allocation1 [shape = 'u32[144,128]{1,0:T(1,128)}', space=vmem, size = 0x12000, scoped, tag = 'internal scratch']
  #allocation2 [shape = 'f32[1]{0:T(128)S(6)}', space=smem, size = 0x200, scoped, tag = 'scoped memory for tpu_custom_call.1']
  %s0 = inlined_call_operand.hbm [shape: f32[4,2,128], index: 0, kind: input, shape index: {}]
  %s1 = inlined_call_operand.vmem [shape: f32[30], index: 1, kind: input, shape index: {}]
  %s2 = inlined_call_operand.<no memory space> [shape: f32[1], index: 2, kind: input, shape index: {}]
  %s3 = inlined_call_operand.vmem [shape: f32[10], index: 3, kind: input, shape index: {}]
  %s4 = inlined_call_operand.vmem [shape: f32[2], index: 4, kind: input, shape index: {}]
  %s5 = inlined_call_operand.hbm [shape: f32[2,2,128], index: 5, kind: output, shape index: {}]
  %s6 = sld [smem:[#allocation0]]
  $region46: #{tpu_custom_call.1} parent=0
    _
  %s8 = ssub.s32 1, %s6
  %s9 = scalar_select 0, %s8, %s6
  %10 = sst [smem:[#allocation2]] %s2
  $region1: #{tpu_custom_call.1} parent=0
    #allocation3 [shape = 'u8[4096]{0}', space=vmem, size = 0x1000, scoped, tag = 'input window, operand 0, single buffered']
    #allocation4 [shape = 's32[1]{0}', space=sflag, size = 0x4, scoped, tag = 'scoped memory for tpu_custom_call.1']
    #allocation5 [shape = 's32[1]{0}', space=sflag, size = 0x4, scoped, tag = 'scoped memory for tpu_custom_call.1']
    #allocation6 [shape = 's32[1]{0}', space=sflag, size = 0x4, scoped, tag = 'scoped memory for tpu_custom_call.1']
    #allocation7 [shape = 'u8[512]{0}', space=smem, size = 0x200, scoped, tag = 'input window, operand 1, single buffered']
    #allocation8 [shape = 'u8[512]{0}', space=smem, size = 0x200, scoped, tag = 'input window, operand 3, single buffered']
    #allocation9 [shape = 's32[1]{0}', space=sflag, size = 0x4, scoped, tag = 'scoped memory for tpu_custom_call.1']
    #allocation10 [shape = 'u8[512]{0}', space=smem, size = 0x200, scoped, tag = 'input window, operand 4, single buffered']
    #allocation11 [shape = 'u8[2048]{0}', space=vmem, size = 0x800, scoped, tag = 'output window, operand 0, single buffered']
    %11 = vsyncpa [#allocation4], 0
    %12 = vsyncpa [#allocation6], 0
    %13 = vsyncpa [#allocation9], 0
    %14 = vsyncpa [#allocation5], 0
    // Predicated region
    $region2: #{tpu_custom_call.1} parent=1 // pred_check
      _
    $region3: #{tpu_custom_call.1} parent=1 // pred_check_branch
      %16 = sbr.rel (0) target = $region5
    $region4: #{tpu_custom_call.1} parent=1 // pred_region
      %s18 = ssub.s32 128, 128
      %19 = vsyncadd [#allocation4], %s18
      %s20 = sshll.u32 [#allocation3], 4
      %s21 = int_to_ptr.vmem [resolvable:$true] %s20
      %26 = dma.hbm_to_vmem [thread:$0]  %s0, 128, %s21, [#allocation4], 32, 32, 2
    $region5: #{tpu_custom_call.1} parent=1 // pred_fallthru
      _
    // Predicated region
    $region6: #{tpu_custom_call.1} parent=1 // pred_check
      _
    $region7: #{tpu_custom_call.1} parent=1 // pred_check_branch
      %28 = sbr.rel (0) target = $region9
    $region8: #{tpu_custom_call.1} parent=1 // pred_region
      %s30 = ssub.s32 16, 16
      %31 = vsyncadd [#allocation6], %s30
      %s33 = sshll.u32 %s1, 4
      %s34 = int_to_ptr.vmem [resolvable:$true] %s33
      %36 = dma.vmem_to_smem %s34, 16, [#allocation7], [#allocation6]
    $region9: #{tpu_custom_call.1} parent=1 // pred_fallthru
      _
    // Predicated region
    $region10: #{tpu_custom_call.1} parent=1 // pred_check
      _
    $region11: #{tpu_custom_call.1} parent=1 // pred_check_branch
      %38 = sbr.rel (0) target = $region13
    $region12: #{tpu_custom_call.1} parent=1 // pred_region
      _
    $region13: #{tpu_custom_call.1} parent=1 // pred_fallthru
      _
    // Predicated region
    $region14: #{tpu_custom_call.1} parent=1 // pred_check
      _
    $region15: #{tpu_custom_call.1} parent=1 // pred_check_branch
      %40 = sbr.rel (0) target = $region17
    $region16: #{tpu_custom_call.1} parent=1 // pred_region
      %s42 = ssub.s32 16, 16
      %43 = vsyncadd [#allocation9], %s42
      %s45 = sshll.u32 %s3, 4
      %s46 = int_to_ptr.vmem [resolvable:$true] %s45
      %48 = dma.vmem_to_smem %s46, 16, [#allocation8], [#allocation9]
    $region17: #{tpu_custom_call.1} parent=1 // pred_fallthru
      _
    // Predicated region
    $region18: #{tpu_custom_call.1} parent=1 // pred_check
      _
    $region19: #{tpu_custom_call.1} parent=1 // pred_check_branch
      %50 = sbr.rel (0) target = $region21
    $region20: #{tpu_custom_call.1} parent=1 // pred_region
      %s52 = ssub.s32 16, 16
      %53 = vsyncadd [#allocation9], %s52
      %s55 = sshll.u32 %s4, 4
      %s56 = int_to_ptr.vmem [resolvable:$true] %s55
      %58 = dma.vmem_to_smem %s56, 16, [#allocation10], [#allocation9]
    $region21: #{tpu_custom_call.1} parent=1 // pred_fallthru
      _
    // Predicated region
    $region22: #{tpu_custom_call.1} parent=1 // pred_check
      _
    $region23: #{tpu_custom_call.1} parent=1 // pred_check_branch
      %60 = sbr.rel (0) target = $region25
    $region24: #{tpu_custom_call.1} parent=1 // pred_region
      %61 = dma.done [#allocation4], 128
    $region25: #{tpu_custom_call.1} parent=1 // pred_fallthru
      _
    // Predicated region
    $region26: #{tpu_custom_call.1} parent=1 // pred_check
      _
    $region27: #{tpu_custom_call.1} parent=1 // pred_check_branch
      %63 = sbr.rel (0) target = $region29
    $region28: #{tpu_custom_call.1} parent=1 // pred_region
      %64 = dma.done [#allocation6], 16
    $region29: #{tpu_custom_call.1} parent=1 // pred_fallthru
      _
    // Predicated region
    $region30: #{tpu_custom_call.1} parent=1 // pred_check
      _
    $region31: #{tpu_custom_call.1} parent=1 // pred_check_branch
      %66 = sbr.rel (0) target = $region33
    $region32: #{tpu_custom_call.1} parent=1 // pred_region
      %67 = dma.done [#allocation9], 16
    $region33: #{tpu_custom_call.1} parent=1 // pred_fallthru
      _
    // Predicated region
    $region34: #{tpu_custom_call.1} parent=1 // pred_check
      _
    $region35: #{tpu_custom_call.1} parent=1 // pred_check_branch
      %69 = sbr.rel (0) target = $region37
    $region36: #{tpu_custom_call.1} parent=1 // pred_region
      %70 = dma.done [#allocation9], 16
    $region37: #{tpu_custom_call.1} parent=1 // pred_fallthru
      _
    %71 = sfence
    %s72 = sld [smem:[#allocation7]]
    %s73 = sld [smem:[#allocation7 + $0x1]]
    %s74 = sld [smem:[#allocation7 + $0x2]]
    %s75 = sld [smem:[#allocation7 + $0x3]]
    %s76 = sld [smem:[#allocation7 + $0x4]]
    %s77 = sld [smem:[#allocation7 + $0x5]]
    %s78 = sld [smem:[#allocation7 + $0x6]]
    %s79 = sld [smem:[#allocation7 + $0x7]]
    %s80 = sld [smem:[#allocation7 + $0x8]]
    %s81 = sld [smem:[#allocation7 + $0x9]]
    %s82 = sld [smem:[#allocation7 + $0xa]]
    %s83 = sld [smem:[#allocation7 + $0xb]]
    %s84 = sld [smem:[#allocation7 + $0xc]]
    %s85 = sld [smem:[#allocation7 + $0xd]]
    %s86 = sld [smem:[#allocation7 + $0xe]]
    %s87 = sld [smem:[#allocation7 + $0xf]]
    %s88 = sld [smem:[#allocation7 + $0x10]]
    %s89 = sld [smem:[#allocation7 + $0x11]]
    %s90 = sld [smem:[#allocation7 + $0x12]]
    %s91 = sld [smem:[#allocation7 + $0x13]]
    %s92 = sld [smem:[#allocation7 + $0x14]]
    %s93 = sld [smem:[#allocation7 + $0x15]]
    %s94 = sld [smem:[#allocation7 + $0x16]]
    %s95 = sld [smem:[#allocation7 + $0x17]]
    %s96 = sld [smem:[#allocation7 + $0x18]]
    %s97 = sld [smem:[#allocation7 + $0x19]]
    %s98 = sld [smem:[#allocation7 + $0x1a]]
    %s99 = sld [smem:[#allocation7 + $0x1b]]
    %s100 = sld [smem:[#allocation7 + $0x1c]]
    %s101 = sld [smem:[#allocation7 + $0x1d]]
    %s102 = sld [smem:[#allocation2]]
    %s103 = sld [smem:[#allocation8]]
    %s104 = sld [smem:[#allocation8 + $0x1]]
    %s105 = sld [smem:[#allocation8 + $0x2]]
    %s106 = sld [smem:[#allocation8 + $0x3]]
    %s107 = sld [smem:[#allocation8 + $0x4]]
    %s108 = sld [smem:[#allocation8 + $0x5]]
    %s109 = sld [smem:[#allocation8 + $0x6]]
    %s110 = sld [smem:[#allocation8 + $0x7]]
    %s111 = sld [smem:[#allocation8 + $0x8]]
    %s112 = sld [smem:[#allocation8 + $0x9]]
    %s113 = sld [smem:[#allocation10]]
    %s114 = sld [smem:[#allocation10 + $0x1]]
    %v115 = vld [vmem:[#allocation3] sm:$0x3]
    %s116 = scalar_lea.vmem [#allocation3], 2
    %v117 = vld [vmem:[%s116] sm:$0x3]
    %s118 = scalar_lea.vmem [#allocation3], 4
    %v119 = vld [vmem:[%s118] sm:$0x3]
    %s120 = scalar_lea.vmem [#allocation3], 6
    %v121 = vld [vmem:[%s120] sm:$0x3]
    %v122 = vmul.f32 %v115, %v115
    %v123 = vmul.f32 %v117, %v117
    %v124 = vadd.f32 %v122, %v123
    %v125 = vrsqrt.pop %v124
    %v126 = vmul.f32 %v124, %v125
    %vm127 = vcmp.eq.f32.partialorder %v124, inf
    %v128 = vsel %vm127, %v124, %v126
    %vm129 = vcmp.eq.f32.partialorder %v124, 0.0
    %v130 = vand.u32 %v124, 2147483648
    %v131 = vsel %vm129, %v130, %v128
    %v132 = vmul.f32 %v119, %v119
    %v133 = vmul.f32 %v121, %v121
    %v134 = vadd.f32 %v132, %v133
    %v135 = vrsqrt.pop %v134
    %v136 = vmul.f32 %v134, %v135
    %vm137 = vcmp.eq.f32.partialorder %v134, inf
    %v138 = vsel %vm137, %v134, %v136
    %vm139 = vcmp.eq.f32.partialorder %v134, 0.0
    %v140 = vand.u32 %v134, 2147483648
    %v141 = vsel %vm139, %v140, %v138
    %v142 = vlaneseq
    %v143 = vand.u32 %v142, 127
    %vm144 = vcmp.ge.s32.totalorder %v143, 2
    %vm145 = vcmp.ge.s32.totalorder %v143, 1
    %vm146 = vcmp.lt.s32.totalorder %v143, 127
    %vm147 = vcmp.lt.s32.totalorder %v143, 126
    %v148 = vstv %s72
    %v149 = vmul.f32 %v148, %v115
    %v150 = vstv %s77
    %v151 = vmul.f32 %v150, %v117
    %v152 = vadd.f32 %v149, %v151
    %v153 = vstv %s82
    %v154 = vmul.f32 %v153, %v119
    %v155 = vstv %s87
    %v156 = vmul.f32 %v155, %v121
    %v157 = vadd.f32 %v154, %v156
    %v158 = vstv %s92
    %v159 = vmul.f32 %v158, %v131
    %v160 = vstv %s97
    %v161 = vmul.f32 %v160, %v141
    %v162 = vadd.f32 %v159, %v161
    %v163 = vadd.f32 %v152, %v157
    %v164 = vadd.f32 %v163, %v162
    %165 = vrot.lane.b32.xlu0 %v164, 2
    %v166 = vpop.permute.xlu0 %165
    %v167 = vsel %vm144, %v166, 0.0
    %v168 = vstv %s73
    %v169 = vmul.f32 %v168, %v115
    %v170 = vstv %s78
    %v171 = vmul.f32 %v170, %v117
    %v172 = vadd.f32 %v169, %v171
    %v173 = vstv %s83
    %v174 = vmul.f32 %v173, %v119
    %v175 = vstv %s88
    %v176 = vmul.f32 %v175, %v121
    %v177 = vadd.f32 %v174, %v176
    %v178 = vstv %s93
    %v179 = vmul.f32 %v178, %v131
    %v180 = vstv %s98
    %v181 = vmul.f32 %v180, %v141
    %v182 = vadd.f32 %v179, %v181
    %v183 = vadd.f32 %v172, %v177
    %v184 = vadd.f32 %v183, %v182
    %185 = vrot.lane.b32.xlu0 %v184, 1
    %v186 = vpop.permute.xlu0 %185
    %v187 = vsel %vm145, %v186, 0.0
    %v188 = vstv %s74
    %v189 = vmul.f32 %v188, %v115
    %v190 = vstv %s79
    %v191 = vmul.f32 %v190, %v117
    %v192 = vadd.f32 %v189, %v191
    %v193 = vstv %s84
    %v194 = vmul.f32 %v193, %v119
    %v195 = vstv %s89
    %v196 = vmul.f32 %v195, %v121
    %v197 = vadd.f32 %v194, %v196
    %v198 = vstv %s94
    %v199 = vmul.f32 %v198, %v131
    %v200 = vstv %s99
    %v201 = vmul.f32 %v200, %v141
    %v202 = vadd.f32 %v199, %v201
    %v203 = vadd.f32 %v192, %v197
    %v204 = vadd.f32 %v203, %v202
    %v205 = vstv %s75
    %v206 = vmul.f32 %v205, %v115
    %v207 = vstv %s80
    %v208 = vmul.f32 %v207, %v117
    %v209 = vadd.f32 %v206, %v208
    %v210 = vstv %s85
    %v211 = vmul.f32 %v210, %v119
    %v212 = vstv %s90
    %v213 = vmul.f32 %v212, %v121
    %v214 = vadd.f32 %v211, %v213
    %v215 = vstv %s95
    %v216 = vmul.f32 %v215, %v131
    %v217 = vstv %s100
    %v218 = vmul.f32 %v217, %v141
    %v219 = vadd.f32 %v216, %v218
    %v220 = vadd.f32 %v209, %v214
    %v221 = vadd.f32 %v220, %v219
    %222 = vrot.lane.b32.xlu0 %v221, 127
    %v223 = vpop.permute.xlu0 %222
    %v224 = vsel %vm146, %v223, 0.0
    %v225 = vstv %s76
    %v226 = vmul.f32 %v225, %v115
    %v227 = vstv %s81
    %v228 = vmul.f32 %v227, %v117
    %v229 = vadd.f32 %v226, %v228
    %v230 = vstv %s86
    %v231 = vmul.f32 %v230, %v119
    %v232 = vstv %s91
    %v233 = vmul.f32 %v232, %v121
    %v234 = vadd.f32 %v231, %v233
    %v235 = vstv %s96
    %v236 = vmul.f32 %v235, %v131
    %v237 = vstv %s101
    %v238 = vmul.f32 %v237, %v141
    %v239 = vadd.f32 %v236, %v238
    %v240 = vadd.f32 %v229, %v234
    %v241 = vadd.f32 %v240, %v239
    %242 = vrot.lane.b32.xlu0 %v241, 126
    %v243 = vpop.permute.xlu0 %242
    %v244 = vsel %vm147, %v243, 0.0
    %v245 = vadd.f32 %v167, %v187
    %v246 = vadd.f32 %v204, %v224
    %v247 = vadd.f32 %v245, %v246
    %v248 = vstv %s102
    %v249 = vadd.f32 %v244, %v248
    %v250 = vadd.f32 %v247, %v249
    %v251 = vsub.f32 0.0, %v250
    %v252 = vmul.f32 %v251, 1.442695
    %v253 = vpow.pop %v252
    %v254 = vadd.f32 %v253, 1.0
    %v255 = vrcp.pop %v254
    %256 = vrot.lane.b32.xlu0 %v255, 2
    %v257 = vpop.permute.xlu0 %256
    %v258 = vsel %vm144, %v257, 0.0
    %259 = vrot.lane.b32.xlu0 %v255, 1
    %v260 = vpop.permute.xlu0 %259
    %v261 = vsel %vm145, %v260, 0.0
    %262 = vrot.lane.b32.xlu0 %v255, 127
    %v263 = vpop.permute.xlu0 %262
    %v264 = vsel %vm146, %v263, 0.0
    %265 = vrot.lane.b32.xlu0 %v255, 126
    %v266 = vpop.permute.xlu0 %265
    %v267 = vsel %vm147, %v266, 0.0
    %v268 = vstv %s103
    %v269 = vmul.f32 %v268, %v258
    %v270 = vstv %s104
    %v271 = vmul.f32 %v270, %v261
    %v272 = vadd.f32 %v269, %v271
    %v273 = vstv %s105
    %v274 = vmul.f32 %v273, %v255
    %v275 = vstv %s106
    %v276 = vmul.f32 %v275, %v264
    %v277 = vadd.f32 %v274, %v276
    %v278 = vadd.f32 %v272, %v277
    %v279 = vstv %s107
    %v280 = vmul.f32 %v279, %v267
    %v281 = vstv %s113
    %v282 = vadd.f32 %v280, %v281
    %v283 = vadd.f32 %v278, %v282
    %v284 = vsub.f32 0.0, %v283
    %v285 = vmul.f32 %v284, 1.442695
    %v286 = vpow.pop %v285
    %v287 = vadd.f32 %v286, 1.0
    %v288 = vrcp.pop %v287
    %289 = vst [vmem:[#allocation11] sm:$0x3] %v288
    %v290 = vstv %s108
    %v291 = vmul.f32 %v290, %v258
    %v292 = vstv %s109
    %v293 = vmul.f32 %v292, %v261
    %v294 = vadd.f32 %v291, %v293
    %v295 = vstv %s110
    %v296 = vmul.f32 %v295, %v255
    %v297 = vstv %s111
    %v298 = vmul.f32 %v297, %v264
    %v299 = vadd.f32 %v296, %v298
    %v300 = vadd.f32 %v294, %v299
    %v301 = vstv %s112
    %v302 = vmul.f32 %v301, %v267
    %v303 = vstv %s114
    %v304 = vadd.f32 %v302, %v303
    %v305 = vadd.f32 %v300, %v304
    %v306 = vsub.f32 0.0, %v305
    %v307 = vmul.f32 %v306, 1.442695
    %v308 = vpow.pop %v307
    %v309 = vadd.f32 %v308, 1.0
    %v310 = vrcp.pop %v309
    %s311 = scalar_lea.vmem [#allocation11], 2
    %312 = vst [vmem:[%s311] sm:$0x3] %v310
    // Predicated region
    $region38: #{tpu_custom_call.1} parent=1 // pred_check
      _
    $region39: #{tpu_custom_call.1} parent=1 // pred_check_branch
      %314 = sbr.rel (0) target = $region41
    $region40: #{tpu_custom_call.1} parent=1 // pred_region
      %s316 = ssub.s32 64, 64
      %317 = vsyncadd [#allocation5], %s316
      %s318 = sshll.u32 [#allocation11], 4
      %s319 = int_to_ptr.vmem [resolvable:$true] %s318
      %324 = dma.vmem_to_hbm [thread:$0]  %s319, 64, %s5, [#allocation5], 32, 32, 2
    $region41: #{tpu_custom_call.1} parent=1 // pred_fallthru
      _
    // Predicated region
    $region42: #{tpu_custom_call.1} parent=1 // pred_check
      _
    $region43: #{tpu_custom_call.1} parent=1 // pred_check_branch
      %326 = sbr.rel (0) target = $region45
    $region44: #{tpu_custom_call.1} parent=1 // pred_region
      %327 = dma.done [#allocation5], 64
    $region45: #{tpu_custom_call.1} parent=1 // pred_fallthru
      _
    %328 = vsyncpa [#allocation4], 1
    %329 = vsyncpa [#allocation5], 1
    %330 = vsyncpa [#allocation6], 1
    %331 = vsyncpa [#allocation9], 1

</llo_original>
